<compile_context>
chip_gen: v6e
topology: v6e:2x2x1
jax: 0.10.0
libtpu: 0.0.40
codegen_flags: <defaults>
</compile_context>

<pallas_src>
import jax
import jax.numpy as jnp
from jax import lax
from jax.experimental import pallas as pl
from jax.experimental.pallas import tpu as pltpu


# ---------------------------------------------------------------------------
# Kernel: weight_map (1x1 conv -> LeakyReLU -> Sigmoid)  *  BatchNorm(x_up)
# ---------------------------------------------------------------------------
def _attention_uru_kernel(g_ref, xu_ref, w_ref, p_ref, o_ref):
    """g_ref, xu_ref, o_ref: (C, bhw); w_ref: (C, C) f32 (pre-scaled by 0.5);
    p_ref: (C, 4) f32 = [0.5*bias, 1/sqrt(var+eps), -mean/sqrt(var+eps), 0]."""
    half_bias = p_ref[:, 0:1]     # 0.5 * conv bias          (C, 1)
    bn_scale = p_ref[:, 1:2]      # 1/sqrt(var + eps)        (C, 1)
    bn_shift = p_ref[:, 2:3]      # -mean/sqrt(var + eps)    (C, 1)

    # 1x1 conv over channels == (C, C) @ (C, bhw) on the MXU.  Guide arrives in
    # its producer dtype; the convert rides along with the MXU feed.
    y = jnp.dot(w_ref[...], g_ref[...].astype(jnp.float32),
                preferred_element_type=jnp.float32)
    y = y + half_bias
    # W and bias are pre-scaled by 0.5 on the host, so y == 0.5 * conv logit:
    #   sigmoid(leaky(z)) = 0.5 + 0.5*tanh(0.5*leaky(z)) = 0.5 + 0.5*tanh(leaky(y))
    # (LeakyReLU commutes with the positive 0.5 scale) -> saves a VPU mul/elem.
    y = jnp.maximum(y, 0.2 * y)                 # LeakyReLU(negative_slope=0.2)
    wmap = 0.5 * jnp.tanh(y) + 0.5              # numerically stable sigmoid (EUP)

    # BatchNorm2d(affine=False) with precomputed batch statistics.
    xn = xu_ref[...].astype(jnp.float32) * bn_scale + bn_shift
    o_ref[...] = (xn * wmap).astype(o_ref.dtype)


# ---------------------------------------------------------------------------
# Helpers
# ---------------------------------------------------------------------------
def _vmem_capacity_bytes():
    try:
        return int(pltpu.get_tpu_info().vmem_capacity_bytes)
    except Exception:
        return 64 * 1024 * 1024     # conservative (v7x-sized) fallback


def _pick_block_hw(hwp, n_batch, bytes_per_hw, io_budget_bytes):
    """Largest 128-multiple divisor of hwp such that (a) the double-buffered
    I/O tiles stay within io_budget_bytes and (b) there are >= 4 grid steps so
    both TensorCores (v7x megacore) get balanced work."""
    assert hwp % 128 == 0
    m = hwp // 128
    d_budget = max(1, io_budget_bytes // (2 * bytes_per_hw * 128))
    need_tiles = max(1, -(-4 // n_batch))               # ceil(4 / N)
    d_grid = max(1, m // need_tiles)
    d_max = max(1, min(d_budget, d_grid, m))
    best = 1
    d = 1
    while d * d <= m:
        if m % d == 0:
            for cand in (d, m // d):
                if cand <= d_max and cand > best:
                    best = cand
        d += 1
    return best * 128


def _interp_matrix(out_size, in_size):
    """Half-pixel (align_corners=False) bilinear interpolation matrix of shape
    (out_size, in_size); matches torch.nn.Upsample(mode='bilinear')."""
    i = jnp.arange(out_size, dtype=jnp.float32)
    src = (i + 0.5) * (float(in_size) / float(out_size)) - 0.5
    src = jnp.clip(src, 0.0, float(in_size - 1))
    lo = jnp.floor(src).astype(jnp.int32)
    hi = jnp.minimum(lo + 1, in_size - 1)
    frac = src - lo.astype(jnp.float32)
    return (jax.nn.one_hot(lo, in_size, dtype=jnp.float32) * (1.0 - frac)[:, None]
            + jax.nn.one_hot(hi, in_size, dtype=jnp.float32) * frac[:, None])


# ---------------------------------------------------------------------------
# Wrapper
# ---------------------------------------------------------------------------
def attention_uru_forward(guide, x, conv_w, conv_b, *, u_size,
                          x_dtype=jnp.bfloat16, out_dtype=jnp.bfloat16,
                          block_hw=None):
    """guide: (N, C, u_h, u_w) NCHW; x: (N, C, Hx, Wx) NCHW.  Returns NCHW."""
    N, C, Hg, Wg = guide.shape
    Nx, Cx, Hx, Wx = x.shape
    assert (Nx, Cx) == (N, C)
    u_h, u_w = (u_size if isinstance(u_size, (tuple, list)) else (u_size, u_size))
    assert (Hg, Wg) == (u_h, u_w), "u_size must match guide spatial size"
    HW = u_h * u_w
    HWp = ((HW + 127) // 128) * 128

    xf = x.astype(jnp.float32)
    R = _interp_matrix(u_h, Hx)           # (u_h, Hx) row interpolation
    Cm = _interp_matrix(u_w, Wx)          # (u_w, Wx) column interpolation

    # ---- Exact BatchNorm2d(affine=False) batch statistics of x_up, computed
    # from the LOW-RES x via Gram matrices (no full-res HBM pass for stats):
    #   sum(x_up)   = rsum @ x @ csum
    #   sum(x_up^2) = <R^T R , x (Cm^T Cm) x^T>
    rsum = jnp.sum(R, axis=0)             # (Hx,)
    csum = jnp.sum(Cm, axis=0)            # (Wx,)
    GR = R.T @ R                          # (Hx, Hx)
    GC = Cm.T @ Cm                        # (Wx, Wx)
    cnt = float(N * HW)
    sum_c = jnp.einsum('nchw,h,w->c', xf, rsum, csum)
    xgc = jnp.einsum('nchw,wv->nchv', xf, GC)
    sumsq_c = jnp.einsum('nchv,nckv,hk->c', xgc, xf, GR)
    mean = sum_c / cnt
    var = jnp.maximum(sumsq_c / cnt - mean * mean, 0.0)    # biased (training BN)
    inv_std = lax.rsqrt(var + 1e-5)

    # ---- Bilinear upsample materialized ONCE, directly in the kernel's
    # x-stream dtype (bf16 by default); the f32 row-interp intermediate is
    # ~Wx/u_w the size of x_up.  (See TODO(synk) in the header for pushing the
    # column interpolation into the kernel.)
    x_rowup = jnp.einsum('hk,nckw->nchw', R, xf)            # (N, C, u_h, Wx)
    x_up = jnp.einsum('nchw,vw->nchv', x_rowup, Cm)         # (N, C, u_h, u_w)
    x_up = x_up.astype(x_dtype)

    # ---- Lane-dense flattened layout (N, C, HWp).  Guide keeps its producer
    # dtype (no standalone cast pass); reshape is a free view.
    g_flat = guide.reshape(N, C, HW)
    xu_flat = x_up.reshape(N, C, HW)
    if HWp != HW:
        # Pad spatial to a multiple of 128 so output blocks are always
        # lane-dense (unmasked vst); padded tail sliced off below.  This costs
        # one extra guide copy only for non-aligned image sizes.
        pad = ((0, 0), (0, 0), (0, HWp - HW))
        g_flat = jnp.pad(g_flat, pad)
        xu_flat = jnp.pad(xu_flat, pad)

    w_half = 0.5 * conv_w.reshape(C, C).astype(jnp.float32)
    params = jnp.stack([0.5 * conv_b.astype(jnp.float32),
                        inv_std,
                        -mean * inv_std,
                        jnp.zeros((C,), jnp.float32)], axis=1)      # (C, 4)

    # ---- Generation-aware tile sizing.
    g_bytes = jnp.dtype(guide.dtype).itemsize
    x_bytes = jnp.dtype(x_dtype).itemsize
    o_bytes = jnp.dtype(out_dtype).itemsize
    bytes_per_hw = C * (g_bytes + x_bytes + o_bytes)
    vmem_cap = _vmem_capacity_bytes()
    io_budget = min(max(vmem_cap // 4, 8 * 1024 * 1024), 24 * 1024 * 1024)
    if block_hw is None:
        block_hw = _pick_block_hw(HWp, N, bytes_per_hw, io_budget)
    assert HWp % block_hw == 0 and block_hw % 128 == 0
    n_tiles = HWp // block_hw

    vmem_limit = 2 * bytes_per_hw * block_hw + 8 * 1024 * 1024
    vmem_limit = max(4 * 1024 * 1024, min(vmem_limit, int(0.85 * vmem_cap)))

    out_flat = pl.pallas_call(
        _attention_uru_kernel,
        out_shape=jax.ShapeDtypeStruct((N, C, HWp), out_dtype),
        grid_spec=pltpu.PrefetchScalarGridSpec(
            num_scalar_prefetch=0,
            grid=(N, n_tiles),
            in_specs=[
                pl.BlockSpec((None, C, block_hw), lambda n, j: (n, 0, j)),  # guide
                pl.BlockSpec((None, C, block_hw), lambda n, j: (n, 0, j)),  # x_up
                pl.BlockSpec((C, C), lambda n, j: (0, 0)),                  # 0.5*W
                pl.BlockSpec((C, 4), lambda n, j: (0, 0)),                  # params
            ],
            out_specs=pl.BlockSpec((None, C, block_hw), lambda n, j: (n, 0, j)),
        ),
        compiler_params=pltpu.CompilerParams(
            dimension_semantics=("parallel", "parallel"),
            vmem_limit_bytes=vmem_limit,
        ),
    )(g_flat, xu_flat, w_half, params)

    return out_flat[:, :, :HW].reshape(N, C, u_h, u_w)


# ---------------------------------------------------------------------------
# Pure-JAX reference matching the PyTorch forward (same interpolation matrices)
# ---------------------------------------------------------------------------
def _reference(guide, x, conv_w, conv_b, u_size):
    u_h, u_w = (u_size if isinstance(u_size, (tuple, list)) else (u_size, u_size))
    N, C, Hx, Wx = x.shape
    xf = x.astype(jnp.float32)
    R = _interp_matrix(u_h, Hx)
    Cm = _interp_matrix(u_w, Wx)
    x_up = jnp.einsum('hk,nckw,vw->nchv', R, xf, Cm)
    mean = jnp.mean(x_up, axis=(0, 2, 3), keepdims=True)
    var = jnp.var(x_up, axis=(0, 2, 3), keepdims=True)
    x_norm = (x_up - mean) * lax.rsqrt(var + 1e-5)
    y = jnp.einsum('oc,nchw->nohw', conv_w.reshape(C, C).astype(jnp.float32),
                   guide.astype(jnp.float32)) + conv_b.reshape(1, C, 1, 1)
    y = jnp.where(y >= 0.0, y, 0.2 * y)
    return x_norm * jax.nn.sigmoid(y)


if __name__ == "__main__":
    key = jax.random.PRNGKey(0)
    k_g, k_x, k_w, k_b, k_g2, k_x2 = jax.random.split(key, 6)

    N, C = 2, 8
    conv_w = 0.1 * jax.random.normal(k_w, (C, C, 1, 1), dtype=jnp.float32)
    conv_b = 0.05 * jax.random.normal(k_b, (C,), dtype=jnp.float32)

    fwd = jax.jit(attention_uru_forward,
                  static_argnames=("u_size", "x_dtype", "out_dtype", "block_hw"))

    # Config A: non-128-multiple spatial size (exercises the pad/slice path)
    # and a non-integer upsample ratio.
    u_size_a = (24, 40)                                   # HW = 960 -> padded to 1024
    guide_a = jax.random.normal(k_g, (N, C) + u_size_a, dtype=jnp.float32)
    x_a = jax.random.normal(k_x, (N, C, 12, 17), dtype=jnp.float32)
    ref_a = jax.block_until_ready(_reference(guide_a, x_a, conv_w, conv_b, u_size_a))

    # f32 streams (tight check).
    out_f32 = jax.block_until_ready(
        fwd(guide_a, x_a, conv_w, conv_b, u_size=u_size_a,
            x_dtype=jnp.float32, out_dtype=jnp.float32))
    assert out_f32.shape == (N, C) + u_size_a
    assert jnp.allclose(out_f32, ref_a, atol=5e-3, rtol=5e-3), "f32 path mismatch"

    # Default bf16 x/out streams (bandwidth-optimized path for v6e/v7x/v5e).
    out_bf16 = jax.block_until_ready(
        fwd(guide_a, x_a, conv_w, conv_b, u_size=u_size_a))
    assert out_bf16.dtype == jnp.bfloat16
    assert jnp.allclose(out_bf16.astype(jnp.float32), ref_a, atol=5e-2, rtol=5e-2), \
        "bf16 path mismatch"

    # Config B: lane-aligned spatial size (no padding), 2x upsample.
    u_size_b = (16, 128)
    guide_b = jax.random.normal(k_g2, (N, C) + u_size_b, dtype=jnp.float32)
    x_b = jax.random.normal(k_x2, (N, C, 8, 64), dtype=jnp.float32)
    ref_b = jax.block_until_ready(_reference(guide_b, x_b, conv_w, conv_b, u_size_b))
    out_b = jax.block_until_ready(fwd(guide_b, x_b, conv_w, conv_b, u_size=u_size_b))
    assert jnp.allclose(out_b.astype(jnp.float32), ref_b, atol=5e-2, rtol=5e-2), \
        "config B mismatch"

    print("KERNEL_OK")
</pallas_src>

<mosaic_0001>
module attributes {stable_mosaic.version = 11 : i64} {
  func.func @_attention_uru_kernel(%arg0: i32, %arg1: i32, %arg2: memref<1x8x512xf32, #tpu.memory_space<vmem>>, %arg3: memref<1x8x512xf32, #tpu.memory_space<vmem>>, %arg4: memref<8x8xf32, #tpu.memory_space<vmem>>, %arg5: memref<8x4xf32, #tpu.memory_space<vmem>>, %arg6: memref<1x8x512xf32, #tpu.memory_space<vmem>>) attributes {dimension_semantics = [#tpu.dimension_semantics<parallel>, #tpu.dimension_semantics<parallel>], iteration_bounds = array<i64: 2, 2>, scalar_prefetch = 0 : i64, scratch_operands = 0 : i64, tpu.core_type = #tpu.core_type<tc>, window_params = [{transform_indices = @transform_0, window_bounds = array<i64: 1, 8, 512>}, {transform_indices = @transform_1, window_bounds = array<i64: 1, 8, 512>}, {pipeline_mode = #tpu.pipeline_mode<synchronous>, transform_indices = @transform_2, window_bounds = array<i64: 8, 8>}, {pipeline_mode = #tpu.pipeline_mode<synchronous>, transform_indices = @transform_3, window_bounds = array<i64: 8, 4>}, {transform_indices = @transform_4, window_bounds = array<i64: 1, 8, 512>}]} {
    %c0 = arith.constant 0 : index
    %c0_0 = arith.constant 0 : index
    %0 = vector.load %arg5[%c0, %c0_0] : memref<8x4xf32, #tpu.memory_space<vmem>>, vector<8x1xf32>
    %c0_1 = arith.constant 0 : index
    %c1 = arith.constant 1 : index
    %1 = vector.load %arg5[%c0_1, %c1] : memref<8x4xf32, #tpu.memory_space<vmem>>, vector<8x1xf32>
    %c0_2 = arith.constant 0 : index
    %c2 = arith.constant 2 : index
    %2 = vector.load %arg5[%c0_2, %c2] : memref<8x4xf32, #tpu.memory_space<vmem>>, vector<8x1xf32>
    %c0_3 = arith.constant 0 : index
    %c0_4 = arith.constant 0 : index
    %3 = vector.load %arg4[%c0_3, %c0_4] : memref<8x8xf32, #tpu.memory_space<vmem>>, vector<8x8xf32>
    %c0_5 = arith.constant 0 : index
    %c0_6 = arith.constant 0 : index
    %c0_7 = arith.constant 0 : index
    %4 = vector.load %arg2[%c0_5, %c0_6, %c0_7] : memref<1x8x512xf32, #tpu.memory_space<vmem>>, vector<1x8x512xf32>
    %5 = vector.shape_cast %4 : vector<1x8x512xf32> to vector<8x512xf32>
    %cst = arith.constant dense<0.000000e+00> : vector<8x512xf32>
    %6 = tpu.matmul %3, %5, %cst {dimension_numbers = #tpu.dot_dimension_numbers<[1], [0], [0], [1], [0, 0, 1, 1], [], []>} : vector<8x8xf32>, vector<8x512xf32>, vector<8x512xf32> -> vector<8x512xf32>
    %7 = vector.broadcast %0 : vector<8x1xf32> to vector<8x512xf32>
    %8 = arith.addf %6, %7 : vector<8x512xf32>
    %cst_8 = arith.constant 2.000000e-01 : f32
    %9 = vector.broadcast %cst_8 : f32 to vector<8x512xf32>
    %10 = arith.mulf %9, %8 : vector<8x512xf32>
    %11 = arith.maximumf %8, %10 : vector<8x512xf32>
    %12 = math.tanh %11 : vector<8x512xf32>
    %cst_9 = arith.constant 5.000000e-01 : f32
    %13 = vector.broadcast %cst_9 : f32 to vector<8x512xf32>
    %14 = arith.mulf %13, %12 : vector<8x512xf32>
    %cst_10 = arith.constant 5.000000e-01 : f32
    %15 = vector.broadcast %cst_10 : f32 to vector<8x512xf32>
    %16 = arith.addf %14, %15 : vector<8x512xf32>
    %c0_11 = arith.constant 0 : index
    %c0_12 = arith.constant 0 : index
    %c0_13 = arith.constant 0 : index
    %17 = vector.load %arg3[%c0_11, %c0_12, %c0_13] : memref<1x8x512xf32, #tpu.memory_space<vmem>>, vector<1x8x512xf32>
    %18 = vector.shape_cast %17 : vector<1x8x512xf32> to vector<8x512xf32>
    %19 = vector.broadcast %1 : vector<8x1xf32> to vector<8x512xf32>
    %20 = arith.mulf %18, %19 : vector<8x512xf32>
    %21 = vector.broadcast %2 : vector<8x1xf32> to vector<8x512xf32>
    %22 = arith.addf %20, %21 : vector<8x512xf32>
    %23 = arith.mulf %22, %16 : vector<8x512xf32>
    %c0_14 = arith.constant 0 : index
    %c0_15 = arith.constant 0 : index
    %c0_16 = arith.constant 0 : index
    %24 = vector.load %arg6[%c0_14, %c0_15, %c0_16] : memref<1x8x512xf32, #tpu.memory_space<vmem>>, vector<1x8x512xf32>
    %25 = vector.shape_cast %24 : vector<1x8x512xf32> to vector<8x512xf32>
    %26 = vector.shape_cast %23 : vector<8x512xf32> to vector<1x8x512xf32>
    tpu.vector_store %arg6[%c0_14, %c0_15, %c0_16], %26 {strides = array<i32>} : memref<1x8x512xf32, #tpu.memory_space<vmem>>, vector<1x8x512xf32>,
    return
  }
  func.func @transform_0(%arg0: i32, %arg1: i32) -> (i32, i32, i32) {
    %c0_i32 = arith.constant 0 : i32
    %c0_i32_0 = arith.constant 0 : i32
    return %arg0, %c0_i32, %arg1 : i32, i32, i32
  }
  func.func @transform_1(%arg0: i32, %arg1: i32) -> (i32, i32, i32) {
    %c0_i32 = arith.constant 0 : i32
    %c0_i32_0 = arith.constant 0 : i32
    return %arg0, %c0_i32, %arg1 : i32, i32, i32
  }
  func.func @transform_2(%arg0: i32, %arg1: i32) -> (i32, i32) {
    %c0_i32 = arith.constant 0 : i32
    %c0_i32_0 = arith.constant 0 : i32
    %c0_i32_1 = arith.constant 0 : i32
    return %c0_i32, %c0_i32_0 : i32, i32
  }
  func.func @transform_3(%arg0: i32, %arg1: i32) -> (i32, i32) {
    %c0_i32 = arith.constant 0 : i32
    %c0_i32_0 = arith.constant 0 : i32
    %c0_i32_1 = arith.constant 0 : i32
    return %c0_i32, %c0_i32_0 : i32, i32
  }
  func.func @transform_4(%arg0: i32, %arg1: i32) -> (i32, i32, i32) {
    %c0_i32 = arith.constant 0 : i32
    %c0_i32_0 = arith.constant 0 : i32
    return %arg0, %c0_i32, %arg1 : i32, i32, i32
  }
}

</mosaic_0001>

<llo_original>
// kernel: mul.67
$region0: #{mul.67}
  #allocation0 [shape = 's32[1]{0}', space=sflag, size = 0x4, scoped, tag = 'scoped memory for mul.67']
  %s0 = inlined_call_operand.vmem [shape: f32[8,1], index: 0, kind: input, shape index: {}]
  %s1 = inlined_call_operand.vmem [shape: f32[8,1], index: 1, kind: input, shape index: {}]
  %s2 = inlined_call_operand.vmem [shape: f32[8,1], index: 2, kind: output, shape index: {}]
  %v3 = vld [vmem:[%s0] sm:$0xff]
  %v4 = vld [vmem:[%s1] sm:$0xff]
  %5 = xla_tuple %v3, %v4
  %6 = xla_tuple %5
  %v7 = vmul.f32 %v3, %v4
  %8 = xla_tuple %v7
  %9 = vst [vmem:[%s2] sm:$0xff] %v7

// kernel: attention_uru_forward.1
$region0: #{attention_uru_forward.1}
  #allocation0 [shape = 'u32[]', space=smem, size = 0x4, offset = 0x4, fixed_abs, tag = 'smem constant byte address 0x4 - core index']
  #allocation1 [shape = 'u32[144,128]{1,0:T(1,128)}', space=vmem, size = 0x12000, scoped, tag = 'internal scratch']
  %s0 = inlined_call_operand.vmem [shape: f32[2,8,1024], index: 0, kind: input, shape index: {}]
  %s1 = inlined_call_operand.vmem [shape: f32[2,8,1024], index: 1, kind: input, shape index: {}]
  %s2 = inlined_call_operand.vmem [shape: f32[8,8], index: 2, kind: input, shape index: {}]
  %s3 = inlined_call_operand.vmem [shape: f32[8,4], index: 3, kind: input, shape index: {}]
  %s4 = inlined_call_operand.vmem [shape: f32[2,8,1024], index: 4, kind: output, shape index: {}]
  %s5 = sld [smem:[#allocation0]]
  $region49: #{attention_uru_forward.1} parent=0
    _
  %s7 = ssub.s32 1, %s5
  %s8 = scalar_select 0, %s7, %s5
  loop: start=0, step=1, limit=6
  $region2: #{attention_uru_forward.1} parent=0 // loop_pre_header
    _
  $region3: #{attention_uru_forward.1} parent=0 // loop_header
    %s10 = sphi 0, %s14
    %p11 = scmp.ge.s32.totalorder %s10, 6
    %s17 = sphi 0, %s29
    %s18 = sphi 0, %s25
    %s19 = sphi 0, %s17
    %s20 = sphi 0, %s18
    %s21 = sphi 0, %s19
    %s22 = sphi 0, %s20
    %s34 = sphi 0, %s36
    %s37 = sphi 0, %s34
    %s38 = sphi 0, %s37
    %s54 = sphi 0, %s38
    %s62 = sphi 0, %s64
    %s65 = sphi 0, %s62
    %s66 = sphi 0, %s65
    %s82 = sphi 0, %s66
    %s86 = sphi 0, %s86
    %s88 = sphi 0, %s86
    %s89 = sphi 0, %s88
    %s103 = sphi 0, %s89
    %s107 = sphi 0, %s107
    %s109 = sphi 0, %s107
    %s110 = sphi 0, %s109
    %s124 = sphi 0, %s110
    %s132 = sphi 0, %s134
    %s135 = sphi 0, %s132
    %s136 = sphi 0, %s135
    %s152 = sphi 0, %s136
  $region4: #{attention_uru_forward.1} parent=0 // loop_header_branch
    %13 = sbr.rel (%p11) target = $region8
  $region5: #{attention_uru_forward.1} parent=0 // loop_body
    %s15 = ssub.s32 %s10, 1
    %s16 = ssub.s32 %s10, 2
    %s23 = sadd.s32 1, %s18
    %p24 = scmp.ge.s32.totalorder %s23, 2
    %s25 = scalar_select %p24, 0, %s23
    %s26 = sadd.s32 1, %s17
    %s27 = scalar_select %p24, %s26, %s17
    %p28 = scmp.ge.s32.totalorder %s27, 2
    %s29 = scalar_select %p28, 0, %s27
    %s30 = ssub.s32 %s17, %s29
    %s31 = ssub.s32 %s18, %s25
    %s32 = sor.u32 %s30, %s31
    %p33 = scmp.eq.s32.totalorder %s32, 0
    %s35 = sadd.s32 %s34, 1
    %s36 = scalar_select %p33, %s34, %s35
    %p39 = pneg %p33
    %p40 = scmp.eq.s32.totalorder %s10, 3
    %p41 = por %p39, %p40
    %p42 = scmp.ne.s32.totalorder %s34, %s37
    %p43 = scmp.eq.s32.totalorder %s10, 0
    %p44 = por %p42, %p43
    %p45 = scmp.ne.s32.totalorder %s34, %s37
    %p46 = scmp.eq.s32.totalorder %s15, 3
    %p47 = por %p45, %p46
    %p48 = scmp.ne.s32.totalorder %s37, %s38
    %p49 = scmp.eq.s32.totalorder %s15, 0
    %p50 = por %p48, %p49
    %p51 = scmp.ne.s32.totalorder %s37, %s38
    %p52 = scmp.eq.s32.totalorder %s16, 3
    %p53 = por %p51, %p52
    %p55 = scmp.ne.s32.totalorder %s38, %s54
    %p56 = scmp.eq.s32.totalorder %s16, 0
    %p57 = por %p55, %p56
    %s58 = ssub.s32 %s17, %s29
    %s59 = ssub.s32 %s18, %s25
    %s60 = sor.u32 %s58, %s59
    %p61 = scmp.eq.s32.totalorder %s60, 0
    %s63 = sadd.s32 %s62, 1
    %s64 = scalar_select %p61, %s62, %s63
    %p67 = pneg %p61
    %p68 = scmp.eq.s32.totalorder %s10, 3
    %p69 = por %p67, %p68
    %p70 = scmp.ne.s32.totalorder %s62, %s65
    %p71 = scmp.eq.s32.totalorder %s10, 0
    %p72 = por %p70, %p71
    %p73 = scmp.ne.s32.totalorder %s62, %s65
    %p74 = scmp.eq.s32.totalorder %s15, 3
    %p75 = por %p73, %p74
    %p76 = scmp.ne.s32.totalorder %s65, %s66
    %p77 = scmp.eq.s32.totalorder %s15, 0
    %p78 = por %p76, %p77
    %p79 = scmp.ne.s32.totalorder %s65, %s66
    %p80 = scmp.eq.s32.totalorder %s16, 3
    %p81 = por %p79, %p80
    %p83 = scmp.ne.s32.totalorder %s66, %s82
    %p84 = scmp.eq.s32.totalorder %s16, 0
    %p85 = por %p83, %p84
    %s87 = sadd.s32 %s86, 1
    %p90 = scmp.eq.s32.totalorder %s10, 3
    %p91 = scmp.ne.s32.totalorder %s86, %s88
    %p92 = scmp.eq.s32.totalorder %s10, 0
    %p93 = por %p91, %p92
    %p94 = scmp.ne.s32.totalorder %s86, %s88
    %p95 = scmp.eq.s32.totalorder %s15, 3
    %p96 = por %p94, %p95
    %p97 = scmp.ne.s32.totalorder %s88, %s89
    %p98 = scmp.eq.s32.totalorder %s15, 0
    %p99 = por %p97, %p98
    %p100 = scmp.ne.s32.totalorder %s88, %s89
    %p101 = scmp.eq.s32.totalorder %s16, 3
    %p102 = por %p100, %p101
    %p104 = scmp.ne.s32.totalorder %s89, %s103
    %p105 = scmp.eq.s32.totalorder %s16, 0
    %p106 = por %p104, %p105
    %s108 = sadd.s32 %s107, 1
    %p111 = scmp.eq.s32.totalorder %s10, 3
    %p112 = scmp.ne.s32.totalorder %s107, %s109
    %p113 = scmp.eq.s32.totalorder %s10, 0
    %p114 = por %p112, %p113
    %p115 = scmp.ne.s32.totalorder %s107, %s109
    %p116 = scmp.eq.s32.totalorder %s15, 3
    %p117 = por %p115, %p116
    %p118 = scmp.ne.s32.totalorder %s109, %s110
    %p119 = scmp.eq.s32.totalorder %s15, 0
    %p120 = por %p118, %p119
    %p121 = scmp.ne.s32.totalorder %s109, %s110
    %p122 = scmp.eq.s32.totalorder %s16, 3
    %p123 = por %p121, %p122
    %p125 = scmp.ne.s32.totalorder %s110, %s124
    %p126 = scmp.eq.s32.totalorder %s16, 0
    %p127 = por %p125, %p126
    %s128 = ssub.s32 %s17, %s29
    %s129 = ssub.s32 %s18, %s25
    %s130 = sor.u32 %s128, %s129
    %p131 = scmp.eq.s32.totalorder %s130, 0
    %s133 = sadd.s32 %s132, 1
    %s134 = scalar_select %p131, %s132, %s133
    %p137 = pneg %p131
    %p138 = scmp.eq.s32.totalorder %s10, 3
    %p139 = por %p137, %p138
    %p140 = scmp.ne.s32.totalorder %s132, %s135
    %p141 = scmp.eq.s32.totalorder %s10, 0
    %p142 = por %p140, %p141
    %p143 = scmp.ne.s32.totalorder %s132, %s135
    %p144 = scmp.eq.s32.totalorder %s15, 3
    %p145 = por %p143, %p144
    %p146 = scmp.ne.s32.totalorder %s135, %s136
    %p147 = scmp.eq.s32.totalorder %s15, 0
    %p148 = por %p146, %p147
    %p149 = scmp.ne.s32.totalorder %s135, %s136
    %p150 = scmp.eq.s32.totalorder %s16, 3
    %p151 = por %p149, %p150
    %p153 = scmp.ne.s32.totalorder %s136, %s152
    %p154 = scmp.eq.s32.totalorder %s16, 0
    %p155 = por %p153, %p154
    %p156 = scmp.le.s32.totalorder 1, %s10
    %p157 = scmp.lt.s32.totalorder %s10, 5
    %p158 = pnand %p156, %p157
    %p159 = pneg %p158
    // Predicated region
    $region9: #{attention_uru_forward.1} parent=5 // pred_check
      _
    $region10: #{attention_uru_forward.1} parent=5 // pred_check_branch
      %161 = sbr.rel (%p158) target = $region12
    $region11: #{attention_uru_forward.1} parent=5 // pred_region
      %s162 = ssub.s32 %s10, 1
      // Predicated region
      $region13: #{attention_uru_forward.1} parent=11 // pred_check
        %p163 = pneg %p99
      $region14: #{attention_uru_forward.1} parent=11 // pred_check_branch
        %165 = sbr.rel (%p163) target = $region16
      $region15: #{attention_uru_forward.1} parent=11 // pred_region
        _
      $region16: #{attention_uru_forward.1} parent=11 // pred_fallthru
        _
      // Predicated region
      $region17: #{attention_uru_forward.1} parent=11 // pred_check
        %p166 = pneg %p120
      $region18: #{attention_uru_forward.1} parent=11 // pred_check_branch
        %168 = sbr.rel (%p166) target = $region20
      $region19: #{attention_uru_forward.1} parent=11 // pred_region
        _
      $region20: #{attention_uru_forward.1} parent=11 // pred_fallthru
        _
    $region12: #{attention_uru_forward.1} parent=5 // pred_fallthru
      _
    %p169 = scmp.lt.s32.totalorder %s10, 4
    // Predicated region
    $region21: #{attention_uru_forward.1} parent=5 // pred_check
      %p170 = pneg %p169
    $region22: #{attention_uru_forward.1} parent=5 // pred_check_branch
      %172 = sbr.rel (%p170) target = $region24
    $region23: #{attention_uru_forward.1} parent=5 // pred_region
      // Predicated region
      $region25: #{attention_uru_forward.1} parent=23 // pred_check
        %p173 = pneg %p44
      $region26: #{attention_uru_forward.1} parent=23 // pred_check_branch
        %175 = sbr.rel (%p173) target = $region28
      $region27: #{attention_uru_forward.1} parent=23 // pred_region
        %s176 = smul.u32 4, %s18
        %p177 = scmp.lt.s32.totalorder %s17, 1
        %s178 = scalar_select %p177, %s17, 1
        %p179 = scmp.lt.s32.totalorder %s176, 7
        %s180 = scalar_select %p179, %s176, 7
        %s181 = smul.addr %s178, 8
        %s182 = sadd.s32 %s180, %s181
        %s183 = smul.addr %s182, 8
        %s184 = scalar_lea.vmem %s0, %s183
        %s185 = smul.u32 4, %s18
      $region28: #{attention_uru_forward.1} parent=23 // pred_fallthru
        _
      // Predicated region
      $region29: #{attention_uru_forward.1} parent=23 // pred_check
        %p186 = pneg %p72
      $region30: #{attention_uru_forward.1} parent=23 // pred_check_branch
        %188 = sbr.rel (%p186) target = $region32
      $region31: #{attention_uru_forward.1} parent=23 // pred_region
        %s189 = smul.u32 4, %s18
        %p190 = scmp.lt.s32.totalorder %s17, 1
        %s191 = scalar_select %p190, %s17, 1
        %p192 = scmp.lt.s32.totalorder %s189, 7
        %s193 = scalar_select %p192, %s189, 7
        %s194 = smul.addr %s191, 8
        %s195 = sadd.s32 %s193, %s194
        %s196 = smul.addr %s195, 8
        %s197 = scalar_lea.vmem %s1, %s196
        %s198 = smul.u32 4, %s18
      $region32: #{attention_uru_forward.1} parent=23 // pred_fallthru
        _
    $region24: #{attention_uru_forward.1} parent=5 // pred_fallthru
      _
    %p199 = scmp.le.s32.totalorder 1, %s10
    %p200 = scmp.lt.s32.totalorder %s10, 5
    %p201 = pnand %p199, %p200
    %p202 = pneg %p201
    // Predicated region
    $region33: #{attention_uru_forward.1} parent=5 // pred_check
      _
    $region34: #{attention_uru_forward.1} parent=5 // pred_check_branch
      %204 = sbr.rel (%p201) target = $region36
    $region35: #{attention_uru_forward.1} parent=5 // pred_region
      %s205 = ssub.s32 %s10, 1
      %s206 = smul.u32 4, %s20
      %p207 = scmp.lt.s32.totalorder %s19, 1
      %s208 = scalar_select %p207, %s19, 1
      %p209 = scmp.lt.s32.totalorder %s206, 7
      %s210 = scalar_select %p209, %s206, 7
      %s211 = smul.addr %s208, 8
      %s212 = sadd.s32 %s210, %s211
      %s213 = smul.addr %s212, 8
      %s214 = scalar_lea.vmem %s0, %s213
      %p215 = pneg %p50
      %p216 = pneg %p47
      %s217 = smul.u32 4, %s20
      %p218 = scmp.lt.s32.totalorder %s19, 1
      %s219 = scalar_select %p218, %s19, 1
      %p220 = scmp.lt.s32.totalorder %s217, 7
      %s221 = scalar_select %p220, %s217, 7
      %s222 = smul.addr %s219, 8
      %s223 = sadd.s32 %s221, %s222
      %s224 = smul.addr %s223, 8
      %s225 = scalar_lea.vmem %s1, %s224
      %p226 = pneg %p78
      %p227 = pneg %p75
      %p228 = pneg %p99
      %p229 = pneg %p96
      %p230 = pneg %p120
      %p231 = pneg %p117
      %p232 = pneg %p148
      %p233 = pneg %p145
      %s234 = smul.u32 4, %s20
      %p235 = scmp.lt.s32.totalorder %s19, 1
      %s236 = scalar_select %p235, %s19, 1
      %p237 = scmp.lt.s32.totalorder %s234, 7
      %s238 = scalar_select %p237, %s234, 7
      %s239 = smul.addr %s236, 8
      %s240 = sadd.s32 %s238, %s239
      %s241 = smul.addr %s240, 8
      %s242 = scalar_lea.vmem %s4, %s241
      %s243 = smul.u32 4, %s20
      %p244 = scmp.lt.s32.totalorder %s19, 1
      %s245 = scalar_select %p244, %s19, 1
      %p246 = scmp.lt.s32.totalorder %s243, 7
      %s247 = scalar_select %p246, %s243, 7
      %s248 = smul.addr %s245, 8
      %s249 = sadd.s32 %s247, %s248
      %s250 = smul.addr %s249, 8
      %s251 = scalar_lea.vmem %s0, %s250
      %s252 = smul.u32 4, %s20
      %s253 = smul.u32 4, %s20
      %p254 = scmp.lt.s32.totalorder %s19, 1
      %s255 = scalar_select %p254, %s19, 1
      %p256 = scmp.lt.s32.totalorder %s253, 7
      %s257 = scalar_select %p256, %s253, 7
      %s258 = smul.addr %s255, 8
      %s259 = sadd.s32 %s257, %s258
      %s260 = smul.addr %s259, 8
      %s261 = scalar_lea.vmem %s1, %s260
      %s262 = smul.u32 4, %s20
      %s263 = smul.u32 4, %s20
      %p264 = scmp.lt.s32.totalorder %s19, 1
      %s265 = scalar_select %p264, %s19, 1
      %p266 = scmp.lt.s32.totalorder %s263, 7
      %s267 = scalar_select %p266, %s263, 7
      %s268 = smul.addr %s265, 8
      %s269 = sadd.s32 %s267, %s268
      %s270 = smul.addr %s269, 8
      %s271 = scalar_lea.vmem %s4, %s270
      %s272 = smul.u32 4, %s20
      %v273 = vld [vmem:[%s3] sm:$0xff]
      %v274 = vld [vmem:[%s2] sm:$0xff]
      %v275 = vld [vmem:[%s251] sm:$0xff]
      %v276 = vld [vmem:[%s251 + $0x8] sm:$0xff]
      %v277 = vld [vmem:[%s251 + $0x10] sm:$0xff]
      %v278 = vld [vmem:[%s251 + $0x18] sm:$0xff]
      %280 = vset.pattern.permute.xlu0 0
      %281 = vperm.xlu0 %280, %v273
      %v282 = vpop.permute.xlu0 %281
      %vm284 = vcmask 64512
      %v286 = vsel %vm284, %v274, 0
      %288 = vmatprep.subr.mxu0 0.0
      %289 = vmatpush1.msra.mxu0 0.0
      %290 = vmatprep.subr.mxu0 0.0
      %291 = vmatpush1.msra.mxu0 0.0
      %292 = vmatprep.subr.mxu0 0.0
      %293 = vmatpush1.msra.mxu0 0.0
      %294 = vmatprep.subr.mxu0 0.0
      %295 = vmatpush1.msra.mxu0 0.0
      %296 = vmatprep.subr.mxu0 0.0
      %297 = vmatpush1.msra.mxu0 0.0
      %298 = vmatprep.subr.mxu0 0.0
      %299 = vmatpush1.msra.mxu0 0.0
      %300 = vmatprep.subr.mxu0 0.0
      %301 = vmatpush1.msra.mxu0 0.0
      %302 = vmatprep.subr.mxu0 0.0
      %303 = vmatpush1.msra.mxu0 0.0
      %304 = vmatprep.subr.mxu0 0.0
      %305 = vmatpush1.msra.mxu0 0.0
      %306 = vmatprep.subr.mxu0 0.0
      %307 = vmatpush1.msra.mxu0 0.0
      %308 = vmatprep.subr.mxu0 0.0
      %309 = vmatpush1.msra.mxu0 0.0
      %310 = vmatprep.subr.mxu0 0.0
      %311 = vmatpush1.msra.mxu0 0.0
      %312 = vmatprep.subr.mxu0 0.0
      %313 = vmatpush1.msra.mxu0 0.0
      %314 = vmatprep.subr.mxu0 0.0
      %315 = vmatpush1.msra.mxu0 0.0
      %316 = vmatprep.subr.mxu0 0.0
      %317 = vmatpush1.msra.mxu0 0.0
      %318 = vmatprep.subr.mxu0 %v276
      %319 = vmatpush1.msra.mxu0 %v275
      %320 = vmatprep.subr.mxu0 0.0
      %321 = vmatpush2.msra.mxu0 0.0
      %322 = vmatprep.subr.mxu0 0.0
      %323 = vmatpush2.msra.mxu0 0.0
      %324 = vmatprep.subr.mxu0 0.0
      %325 = vmatpush2.msra.mxu0 0.0
      %326 = vmatprep.subr.mxu0 0.0
      %327 = vmatpush2.msra.mxu0 0.0
      %328 = vmatprep.subr.mxu0 0.0
      %329 = vmatpush2.msra.mxu0 0.0
      %330 = vmatprep.subr.mxu0 0.0
      %331 = vmatpush2.msra.mxu0 0.0
      %332 = vmatprep.subr.mxu0 0.0
      %333 = vmatpush2.msra.mxu0 0.0
      %334 = vmatprep.subr.mxu0 0.0
      %335 = vmatpush2.msra.mxu0 0.0
      %336 = vmatprep.subr.mxu0 0.0
      %337 = vmatpush2.msra.mxu0 0.0
      %338 = vmatprep.subr.mxu0 0.0
      %339 = vmatpush2.msra.mxu0 0.0
      %340 = vmatprep.subr.mxu0 0.0
      %341 = vmatpush2.msra.mxu0 0.0
      %342 = vmatprep.subr.mxu0 0.0
      %343 = vmatpush2.msra.mxu0 0.0
      %344 = vmatprep.subr.mxu0 0.0
      %345 = vmatpush2.msra.mxu0 0.0
      %346 = vmatprep.subr.mxu0 0.0
      %347 = vmatpush2.msra.mxu0 0.0
      %348 = vmatprep.subr.mxu0 0.0
      %349 = vmatpush2.msra.mxu0 0.0
      %350 = vmatprep.subr.mxu0 0.0
      %351 = vmatpush2.msra.mxu0 0.0
      %352 = vmatprep.mubr.f32.mxu0 0.0
      %353 = vmatmul.mubr.f32.gmra.mxu0 %v286
      %v354 = vpop.f32.mrf.mxu0
      %v355 = vadd.f32 %v282, %v354
      %v356 = vpop.f32.mrf.mxu0
      %v357 = vadd.f32 %v282, %v356
      %358 = vdwg.mxu0
      %359 = vmatprep.subr.mxu0 0.0
      %360 = vmatpush1.msra.mxu0 0.0
      %361 = vmatprep.subr.mxu0 0.0
      %362 = vmatpush1.msra.mxu0 0.0
      %363 = vmatprep.subr.mxu0 0.0
      %364 = vmatpush1.msra.mxu0 0.0
      %365 = vmatprep.subr.mxu0 0.0
      %366 = vmatpush1.msra.mxu0 0.0
      %367 = vmatprep.subr.mxu0 0.0
      %368 = vmatpush1.msra.mxu0 0.0
      %369 = vmatprep.subr.mxu0 0.0
      %370 = vmatpush1.msra.mxu0 0.0
      %371 = vmatprep.subr.mxu0 0.0
      %372 = vmatpush1.msra.mxu0 0.0
      %373 = vmatprep.subr.mxu0 0.0
      %374 = vmatpush1.msra.mxu0 0.0
      %375 = vmatprep.subr.mxu0 0.0
      %376 = vmatpush1.msra.mxu0 0.0
      %377 = vmatprep.subr.mxu0 0.0
      %378 = vmatpush1.msra.mxu0 0.0
      %379 = vmatprep.subr.mxu0 0.0
      %380 = vmatpush1.msra.mxu0 0.0
      %381 = vmatprep.subr.mxu0 0.0
      %382 = vmatpush1.msra.mxu0 0.0
      %383 = vmatprep.subr.mxu0 0.0
      %384 = vmatpush1.msra.mxu0 0.0
      %385 = vmatprep.subr.mxu0 0.0
      %386 = vmatpush1.msra.mxu0 0.0
      %387 = vmatprep.subr.mxu0 0.0
      %388 = vmatpush1.msra.mxu0 0.0
      %389 = vmatprep.subr.mxu0 %v278
      %390 = vmatpush1.msra.mxu0 %v277
      %391 = vmatprep.subr.mxu0 0.0
      %392 = vmatpush2.msra.mxu0 0.0
      %393 = vmatprep.subr.mxu0 0.0
      %394 = vmatpush2.msra.mxu0 0.0
      %395 = vmatprep.subr.mxu0 0.0
      %396 = vmatpush2.msra.mxu0 0.0
      %397 = vmatprep.subr.mxu0 0.0
      %398 = vmatpush2.msra.mxu0 0.0
      %399 = vmatprep.subr.mxu0 0.0
      %400 = vmatpush2.msra.mxu0 0.0
      %401 = vmatprep.subr.mxu0 0.0
      %402 = vmatpush2.msra.mxu0 0.0
      %403 = vmatprep.subr.mxu0 0.0
      %404 = vmatpush2.msra.mxu0 0.0
      %405 = vmatprep.subr.mxu0 0.0
      %406 = vmatpush2.msra.mxu0 0.0
      %407 = vmatprep.subr.mxu0 0.0
      %408 = vmatpush2.msra.mxu0 0.0
      %409 = vmatprep.subr.mxu0 0.0
      %410 = vmatpush2.msra.mxu0 0.0
      %411 = vmatprep.subr.mxu0 0.0
      %412 = vmatpush2.msra.mxu0 0.0
      %413 = vmatprep.subr.mxu0 0.0
      %414 = vmatpush2.msra.mxu0 0.0
      %415 = vmatprep.subr.mxu0 0.0
      %416 = vmatpush2.msra.mxu0 0.0
      %417 = vmatprep.subr.mxu0 0.0
      %418 = vmatpush2.msra.mxu0 0.0
      %419 = vmatprep.subr.mxu0 0.0
      %420 = vmatpush2.msra.mxu0 0.0
      %421 = vmatprep.subr.mxu0 0.0
      %422 = vmatpush2.msra.mxu0 0.0
      %423 = vmatprep.mubr.f32.mxu0 0.0
      %424 = vmatmul.mubr.f32.gmra.mxu0 %v286
      %v425 = vpop.f32.mrf.mxu0
      %v426 = vadd.f32 %v282, %v425
      %v427 = vpop.f32.mrf.mxu0
      %v428 = vadd.f32 %v282, %v427
      %429 = vdwg.mxu0
      %v430 = vmul.f32 %v355, 0.2
      %v431 = vmul.f32 %v357, 0.2
      %v432 = vmul.f32 %v426, 0.2
      %v433 = vmul.f32 %v428, 0.2
      %v434 = vmax.f32 %v355, %v430
      %v435 = vmax.f32 %v357, %v431
      %v436 = vmax.f32 %v426, %v432
      %v437 = vmax.f32 %v428, %v433
      %v438 = vtanh.pop %v434
      %v439 = vtanh.pop %v435
      %v440 = vtanh.pop %v436
      %v441 = vtanh.pop %v437
      %v442 = vmul.f32 %v438, 0.5
      %v443 = vmul.f32 %v439, 0.5
      %v444 = vmul.f32 %v440, 0.5
      %v445 = vmul.f32 %v441, 0.5
      %v446 = vadd.f32 %v442, 0.5
      %v447 = vadd.f32 %v443, 0.5
      %v448 = vadd.f32 %v444, 0.5
      %v449 = vadd.f32 %v445, 0.5
      %v450 = vld [vmem:[%s261] sm:$0xff]
      %v451 = vld [vmem:[%s261 + $0x8] sm:$0xff]
      %v452 = vld [vmem:[%s261 + $0x10] sm:$0xff]
      %v453 = vld [vmem:[%s261 + $0x18] sm:$0xff]
      %454 = vset.pattern.permute.xlu0 1
      %455 = vperm.xlu0 %454, %v273
      %v456 = vpop.permute.xlu0 %455
      %v458 = vmul.f32 %v450, %v456
      %v459 = vmul.f32 %v451, %v456
      %v460 = vmul.f32 %v452, %v456
      %v461 = vmul.f32 %v453, %v456
      %462 = vset.pattern.permute.xlu0 2
      %463 = vperm.xlu0 %462, %v273
      %v464 = vpop.permute.xlu0 %463
      %v466 = vadd.f32 %v458, %v464
      %v467 = vadd.f32 %v459, %v464
      %v468 = vadd.f32 %v460, %v464
      %v469 = vadd.f32 %v461, %v464
      %v470 = vmul.f32 %v466, %v446
      %v471 = vmul.f32 %v467, %v447
      %v472 = vmul.f32 %v468, %v448
      %v473 = vmul.f32 %v469, %v449
      %474 = vst [vmem:[%s271] sm:$0xff] %v470
      %475 = vst [vmem:[%s271 + $0x8] sm:$0xff] %v471
      %476 = vst [vmem:[%s271 + $0x10] sm:$0xff] %v472
      %477 = vst [vmem:[%s271 + $0x18] sm:$0xff] %v473
      %s478 = smul.u32 4, %s20
      %p479 = scmp.lt.s32.totalorder %s19, 1
      %s480 = scalar_select %p479, %s19, 1
      %p481 = scmp.lt.s32.totalorder %s478, 7
      %s482 = scalar_select %p481, %s478, 7
      %s483 = smul.addr %s480, 8
      %s484 = sadd.s32 %s482, %s483
      %s485 = smul.addr %s484, 8
      %s486 = scalar_lea.vmem %s4, %s485
      // Predicated region
      $region37: #{attention_uru_forward.1} parent=35 // pred_check
        %p487 = pneg %p145
      $region38: #{attention_uru_forward.1} parent=35 // pred_check_branch
        %489 = sbr.rel (%p487) target = $region40
      $region39: #{attention_uru_forward.1} parent=35 // pred_region
        %s490 = smul.u32 4, %s20
      $region40: #{attention_uru_forward.1} parent=35 // pred_fallthru
        _
    $region36: #{attention_uru_forward.1} parent=5 // pred_fallthru
      _
    %p491 = scmp.le.s32.totalorder 2, %s10
    // Predicated region
    $region41: #{attention_uru_forward.1} parent=5 // pred_check
      %p492 = pneg %p491
    $region42: #{attention_uru_forward.1} parent=5 // pred_check_branch
      %494 = sbr.rel (%p492) target = $region44
    $region43: #{attention_uru_forward.1} parent=5 // pred_region
      %s495 = ssub.s32 %s10, 2
      // Predicated region
      $region45: #{attention_uru_forward.1} parent=43 // pred_check
        %p496 = pneg %p151
      $region46: #{attention_uru_forward.1} parent=43 // pred_check_branch
        %498 = sbr.rel (%p496) target = $region48
      $region47: #{attention_uru_forward.1} parent=43 // pred_region
        %s499 = smul.u32 4, %s22
        %p500 = scmp.lt.s32.totalorder %s21, 1
        %s501 = scalar_select %p500, %s21, 1
        %p502 = scmp.lt.s32.totalorder %s499, 7
        %s503 = scalar_select %p502, %s499, 7
        %s504 = smul.addr %s501, 8
        %s505 = sadd.s32 %s503, %s504
        %s506 = smul.addr %s505, 8
        %s507 = scalar_lea.vmem %s4, %s506
      $region48: #{attention_uru_forward.1} parent=43 // pred_fallthru
        _
    $region44: #{attention_uru_forward.1} parent=5 // pred_fallthru
      _
  $region6: #{attention_uru_forward.1} parent=0 // loop_footer
    %s14 = sadd.s32 1, %s10
  $region7: #{attention_uru_forward.1} parent=0 // loop_footer_branch
    %9 = sbr.rel target = $region3
  $region8: #{attention_uru_forward.1} parent=0 // loop_exit
    _

</llo_original>
